<compile_context>
chip_gen: v7x
topology: tpu7x:2x2x1
jax: 0.10.0
libtpu: 0.0.40
codegen_flags: <defaults>
</compile_context>

<pallas_src>
import jax
import jax.numpy as jnp
from jax import lax
from jax.experimental import pallas as pl
from jax.experimental.pallas import tpu as pltpu


def attention_kernel(lens_ref,                      # (B,) int32 in SMEM (scalar prefetch)
                     h_ref,                         # (T, L)   listener slice for batch b
                     sp_ref,                        # (1, 1, S) speller state for batch b
                     wsv_ref, bsv_ref,              # (L, 2A), (1, 2A)  fused score|value
                     wp_ref, bp_ref,                # (S, A), (1, A)    project
                     ctx_ref, score_ref):           # (1, 1, A), (1, 1, T)
    b = pl.program_id(0)
    T = h_ref.shape[0]
    A = wsv_ref.shape[1] // 2

    # Fused score/value projection: single (T, L) @ (L, 2A) MXU matmul + ReLU.
    feat = jnp.dot(h_ref[...], wsv_ref[...], preferred_element_type=jnp.float32)
    feat = jnp.maximum(feat + bsv_ref[...], 0.0)            # (T, 2A)
    sc_feat = feat[:, :A]                                   # (T, A)  score features
    ctx_feat = feat[:, A:]                                  # (T, A)  value features

    # decode_project = ReLU(speller @ Wp^T + bp)  -> (1, A)
    dec = jnp.dot(sp_ref[0], wp_ref[...], preferred_element_type=jnp.float32)
    dec = jnp.maximum(dec + bp_ref[...], 0.0)               # (1, A)

    # Attention logits on the MXU: contract over A -> (1, T).
    logits = lax.dot_general(dec, sc_feat, (((1,), (1,)), ((), ())),
                             preferred_element_type=jnp.float32)

    # Length mask: additive -100 for t >= listener_len[b] (matches torch loop).
    t_idx = lax.broadcasted_iota(jnp.int32, logits.shape, 1)
    logits = logits + jnp.where(t_idx >= lens_ref[b],
                                jnp.float32(-100.0), jnp.float32(0.0))

    # Softmax over time (lane axis); reciprocal on the EUP.
    m = jnp.max(logits, axis=1, keepdims=True)
    e = jnp.exp(logits - m)
    probs = e * pl.reciprocal(jnp.sum(e, axis=1, keepdims=True), approx=True)

    # Context on the MXU: (1, T) @ (T, A) -> (1, A).
    ctx = jnp.dot(probs, ctx_feat, preferred_element_type=jnp.float32)

    score_ref[0] = probs.astype(score_ref.dtype)
    ctx_ref[0] = ctx.astype(ctx_ref.dtype)


def init_params(key, attention_size=128, listener_size=256, speller_size=256):
    """Deterministic nn.Linear-style init (uniform in +-1/sqrt(fan_in))."""
    ks = jax.random.split(key, 6)

    def lin(kw, kb, out_f, in_f):
        bound = 1.0 / jnp.sqrt(in_f)
        w = jax.random.uniform(kw, (out_f, in_f), jnp.float32, -bound, bound)
        b = jax.random.uniform(kb, (1, out_f), jnp.float32, -bound, bound)
        return w, b

    ws, bs = lin(ks[0], ks[1], attention_size, listener_size)
    wv, bv = lin(ks[2], ks[3], attention_size, listener_size)
    wp, bp = lin(ks[4], ks[5], attention_size, speller_size)
    return dict(ws=ws, bs=bs, wv=wv, bv=bv, wp=wp, bp=bp)


def pack_params(params):
    """Fuse + pre-transpose weights once (outside the kernel) into
    matmul-friendly (in_features, out_features) layout."""
    wsv = jnp.concatenate([params['ws'].T, params['wv'].T], axis=1)   # (L, 2A)
    bsv = jnp.concatenate([params['bs'], params['bv']], axis=1)       # (1, 2A)
    return dict(wsv=wsv, bsv=bsv, wp=params['wp'].T, bp=params['bp'])  # wp: (S, A)


def attention_forward(listener_state, listener_len, speller_state, packed,
                      batch_first=False):
    # Kernel consumes time-major data; only convert if the caller is batch-first.
    if batch_first:
        listener_state = jnp.transpose(listener_state, (1, 0, 2))     # -> (T, B, L)

    T, B, L = listener_state.shape
    S = speller_state.shape[-1]
    A2 = packed['wsv'].shape[1]
    A = A2 // 2

    # Free, contiguous reshapes (no transpose of the big listener tensor).
    h2d = listener_state.reshape(T, B * L)          # (T, B*L); batch b = cols [b*L,(b+1)*L)
    sp3d = speller_state.reshape(B, 1, S)           # (B, 1, S)
    lens = listener_len.astype(jnp.int32).reshape(B)

    grid_spec = pltpu.PrefetchScalarGridSpec(
        num_scalar_prefetch=1,                       # lens -> SMEM
        grid=(B,),
        in_specs=[
            pl.BlockSpec((T, L), lambda b, _lens: (0, b)),        # listener[:, b, :]
            pl.BlockSpec((1, 1, S), lambda b, _lens: (b, 0, 0)),  # speller[b]
            pl.BlockSpec((L, A2), lambda b, _lens: (0, 0)),       # fused W (resident)
            pl.BlockSpec((1, A2), lambda b, _lens: (0, 0)),
            pl.BlockSpec((S, A), lambda b, _lens: (0, 0)),
            pl.BlockSpec((1, A), lambda b, _lens: (0, 0)),
        ],
        out_specs=(
            pl.BlockSpec((1, 1, A), lambda b, _lens: (b, 0, 0)),  # context row b
            pl.BlockSpec((1, 1, T), lambda b, _lens: (b, 0, 0)),  # score row b
        ),
    )

    ctx3, score3 = pl.pallas_call(
        attention_kernel,
        out_shape=(jax.ShapeDtypeStruct((B, 1, A), jnp.float32),
                   jax.ShapeDtypeStruct((B, 1, T), jnp.float32)),
        grid_spec=grid_spec,
        compiler_params=pltpu.CompilerParams(
            dimension_semantics=("parallel",)),       # batch axis -> megacore on v7x
    )(lens, h2d, sp3d, packed['wsv'], packed['bsv'], packed['wp'], packed['bp'])

    return ctx3.reshape(B, A), score3.reshape(B, T)


def _reference(listener_state, listener_len, speller_state, params,
               batch_first=False):
    """Pure-JAX reference for sanity checking (matches the PyTorch module)."""
    if not batch_first:
        listener_state = jnp.transpose(listener_state, (1, 0, 2))
    relu = lambda x: jnp.maximum(x, 0.0)
    sc = relu(listener_state @ params['ws'].T + params['bs'][0])     # (B,T,A)
    cv = relu(listener_state @ params['wv'].T + params['bv'][0])     # (B,T,A)
    dec = relu(speller_state @ params['wp'].T + params['bp'][0])     # (B,A)
    logits = jnp.einsum('ba,bta->bt', dec, sc)
    T = logits.shape[1]
    t_idx = jnp.arange(T)[None, :]
    logits = logits + jnp.where(t_idx >= listener_len[:, None], -100.0, 0.0)
    probs = jax.nn.softmax(logits, axis=1)
    ctx = jnp.einsum('bt,bta->ba', probs, cv)
    return ctx, probs


if __name__ == "__main__":
    ATT, LIS, SPE = 128, 256, 256
    B, T = 2, 8

    key = jax.random.PRNGKey(0)
    k_par, k_lis, k_spe = jax.random.split(key, 3)

    params = init_params(k_par, ATT, LIS, SPE)
    packed = pack_params(params)

    listener_state = jax.random.normal(k_lis, (T, B, LIS), jnp.float32)  # (T,B,L)
    speller_state = jax.random.normal(k_spe, (B, SPE), jnp.float32)      # (B,S)
    listener_len = jnp.array([T, 5], dtype=jnp.int32)                    # (B,)

    ctx, score = attention_forward(listener_state, listener_len,
                                   speller_state, packed, batch_first=False)
    jax.block_until_ready((ctx, score))

    ref_ctx, ref_score = _reference(listener_state, listener_len,
                                    speller_state, params, batch_first=False)
    assert ctx.shape == (B, ATT) and score.shape == (B, T)
    # approx=True reciprocal in the softmax -> allow a slightly looser tolerance.
    assert jnp.allclose(score, ref_score, atol=1e-2, rtol=1e-2)
    assert jnp.allclose(ctx, ref_ctx, atol=1e-2, rtol=1e-2)

    print("KERNEL_OK")
</pallas_src>

<mosaic_0001>
module attributes {stable_mosaic.version = 11 : i64} {
  func.func @attention_kernel(%arg0: i32, %arg1: memref<2xi32, #tpu.memory_space<smem>>, %arg2: memref<8x256xf32, #tpu.memory_space<vmem>>, %arg3: memref<1x1x256xf32, #tpu.memory_space<vmem>>, %arg4: memref<256x256xf32, #tpu.memory_space<vmem>>, %arg5: memref<1x256xf32, #tpu.memory_space<vmem>>, %arg6: memref<256x128xf32, #tpu.memory_space<vmem>>, %arg7: memref<1x128xf32, #tpu.memory_space<vmem>>, %arg8: memref<1x1x128xf32, #tpu.memory_space<vmem>>, %arg9: memref<1x1x8xf32, #tpu.memory_space<vmem>>) attributes {dimension_semantics = [#tpu.dimension_semantics<parallel>], iteration_bounds = array<i64: 2>, scalar_prefetch = 1 : i64, scratch_operands = 0 : i64, tpu.core_type = #tpu.core_type<tc>, window_params = [{transform_indices = @transform_0, window_bounds = array<i64: 8, 256>}, {transform_indices = @transform_1, window_bounds = array<i64: 1, 1, 256>}, {pipeline_mode = #tpu.pipeline_mode<synchronous>, transform_indices = @transform_2, window_bounds = array<i64: 256, 256>}, {pipeline_mode = #tpu.pipeline_mode<synchronous>, transform_indices = @transform_3, window_bounds = array<i64: 1, 256>}, {pipeline_mode = #tpu.pipeline_mode<synchronous>, transform_indices = @transform_4, window_bounds = array<i64: 256, 128>}, {pipeline_mode = #tpu.pipeline_mode<synchronous>, transform_indices = @transform_5, window_bounds = array<i64: 1, 128>}, {transform_indices = @transform_6, window_bounds = array<i64: 1, 1, 128>}, {transform_indices = @transform_7, window_bounds = array<i64: 1, 1, 8>}]} {
    %c0 = arith.constant 0 : index
    %c0_0 = arith.constant 0 : index
    %0 = vector.load %arg2[%c0, %c0_0] : memref<8x256xf32, #tpu.memory_space<vmem>>, vector<8x256xf32>
    %c0_1 = arith.constant 0 : index
    %c0_2 = arith.constant 0 : index
    %1 = vector.load %arg4[%c0_1, %c0_2] : memref<256x256xf32, #tpu.memory_space<vmem>>, vector<256x256xf32>
    %cst = arith.constant dense<0.000000e+00> : vector<8x256xf32>
    %2 = tpu.matmul %0, %1, %cst {dimension_numbers = #tpu.dot_dimension_numbers<[1], [0], [0], [1], [0, 0, 1, 1], [], []>} : vector<8x256xf32>, vector<256x256xf32>, vector<8x256xf32> -> vector<8x256xf32>
    %c0_3 = arith.constant 0 : index
    %c0_4 = arith.constant 0 : index
    %3 = vector.load %arg5[%c0_3, %c0_4] : memref<1x256xf32, #tpu.memory_space<vmem>>, vector<1x256xf32>
    %4 = vector.broadcast %3 : vector<1x256xf32> to vector<8x256xf32>
    %5 = arith.addf %2, %4 : vector<8x256xf32>
    %cst_5 = arith.constant 0.000000e+00 : f32
    %6 = vector.broadcast %cst_5 : f32 to vector<8x256xf32>
    %7 = arith.maximumf %5, %6 : vector<8x256xf32>
    %8 = vector.extract_strided_slice %7 {offsets = [0, 0], sizes = [8, 128], strides = [1, 1]} : vector<8x256xf32> to vector<8x128xf32>
    %9 = vector.extract_strided_slice %7 {offsets = [0, 128], sizes = [8, 128], strides = [1, 1]} : vector<8x256xf32> to vector<8x128xf32>
    %c0_6 = arith.constant 0 : index
    %c0_7 = arith.constant 0 : index
    %c0_8 = arith.constant 0 : index
    %10 = vector.load %arg3[%c0_6, %c0_7, %c0_8] : memref<1x1x256xf32, #tpu.memory_space<vmem>>, vector<1x1x256xf32>
    %11 = vector.shape_cast %10 : vector<1x1x256xf32> to vector<1x256xf32>
    %c0_9 = arith.constant 0 : index
    %c0_10 = arith.constant 0 : index
    %12 = vector.load %arg6[%c0_9, %c0_10] : memref<256x128xf32, #tpu.memory_space<vmem>>, vector<256x128xf32>
    %cst_11 = arith.constant dense<0.000000e+00> : vector<1x128xf32>
    %13 = tpu.matmul %11, %12, %cst_11 {dimension_numbers = #tpu.dot_dimension_numbers<[1], [0], [0], [1], [0, 0, 1, 1], [], []>} : vector<1x256xf32>, vector<256x128xf32>, vector<1x128xf32> -> vector<1x128xf32>
    %c0_12 = arith.constant 0 : index
    %c0_13 = arith.constant 0 : index
    %14 = vector.load %arg7[%c0_12, %c0_13] : memref<1x128xf32, #tpu.memory_space<vmem>>, vector<1x128xf32>
    %15 = arith.addf %13, %14 : vector<1x128xf32>
    %cst_14 = arith.constant 0.000000e+00 : f32
    %16 = vector.broadcast %cst_14 : f32 to vector<1x128xf32>
    %17 = arith.maximumf %15, %16 : vector<1x128xf32>
    %cst_15 = arith.constant dense<0.000000e+00> : vector<1x8xf32>
    %18 = tpu.matmul %17, %8, %cst_15 {dimension_numbers = #tpu.dot_dimension_numbers<[1], [1], [0], [0], [0, 0, 1, 0], [], []>} : vector<1x128xf32>, vector<8x128xf32>, vector<1x8xf32> -> vector<1x8xf32>
    %19 = tpu.iota {dimensions = array<i32: 1>} : vector<1x8xi32>
    %20 = arith.index_cast %arg0 : i32 to index
    %21 = memref.load %arg1[%20] : memref<2xi32, #tpu.memory_space<smem>>
    %22 = vector.broadcast %21 : i32 to vector<1x8xi32>
    %23 = arith.cmpi sge, %19, %22 : vector<1x8xi32>
    %cst_16 = arith.constant -1.000000e+02 : f32
    %cst_17 = arith.constant 0.000000e+00 : f32
    %24 = vector.broadcast %cst_16 : f32 to vector<1x8xf32>
    %25 = vector.broadcast %cst_17 : f32 to vector<1x8xf32>
    %26 = arith.select %23, %24, %25 : vector<1x8xi1>, vector<1x8xf32>
    %27 = arith.addf %18, %26 : vector<1x8xf32>
    %cst_18 = arith.constant dense<0xFF800000> : vector<1xf32>
    %28 = vector.multi_reduction <maximumf>, %27, %cst_18 [1] : vector<1x8xf32> to vector<1xf32>
    %29 = vector.shape_cast %28 : vector<1xf32> to vector<1x1xf32>
    %30 = vector.broadcast %29 : vector<1x1xf32> to vector<1x8xf32>
    %31 = arith.subf %27, %30 : vector<1x8xf32>
    %32 = math.exp %31 : vector<1x8xf32>
    %cst_19 = arith.constant dense<0.000000e+00> : vector<1xf32>
    %33 = vector.multi_reduction <add>, %32, %cst_19 [1] : vector<1x8xf32> to vector<1xf32>
    %34 = vector.shape_cast %33 : vector<1xf32> to vector<1x1xf32>
    %35 = tpu.reciprocal %34 {approx = true} : vector<1x1xf32> -> vector<1x1xf32>
    %36 = vector.broadcast %35 : vector<1x1xf32> to vector<1x8xf32>
    %37 = arith.mulf %32, %36 : vector<1x8xf32>
    %cst_20 = arith.constant dense<0.000000e+00> : vector<1x128xf32>
    %38 = tpu.matmul %37, %9, %cst_20 {dimension_numbers = #tpu.dot_dimension_numbers<[1], [0], [0], [1], [0, 0, 1, 1], [], []>} : vector<1x8xf32>, vector<8x128xf32>, vector<1x128xf32> -> vector<1x128xf32>
    %c0_21 = arith.constant 0 : index
    %c0_22 = arith.constant 0 : index
    %c0_23 = arith.constant 0 : index
    %39 = vector.load %arg9[%c0_21, %c0_22, %c0_23] : memref<1x1x8xf32, #tpu.memory_space<vmem>>, vector<1x1x8xf32>
    %40 = vector.shape_cast %39 : vector<1x1x8xf32> to vector<1x8xf32>
    %41 = vector.shape_cast %37 : vector<1x8xf32> to vector<1x1x8xf32>
    tpu.vector_store %arg9[%c0_21, %c0_22, %c0_23], %41 {strides = array<i32>} : memref<1x1x8xf32, #tpu.memory_space<vmem>>, vector<1x1x8xf32>,
    %c0_24 = arith.constant 0 : index
    %c0_25 = arith.constant 0 : index
    %c0_26 = arith.constant 0 : index
    %42 = vector.load %arg8[%c0_24, %c0_25, %c0_26] : memref<1x1x128xf32, #tpu.memory_space<vmem>>, vector<1x1x128xf32>
    %43 = vector.shape_cast %42 : vector<1x1x128xf32> to vector<1x128xf32>
    %44 = vector.shape_cast %38 : vector<1x128xf32> to vector<1x1x128xf32>
    tpu.vector_store %arg8[%c0_24, %c0_25, %c0_26], %44 {strides = array<i32>} : memref<1x1x128xf32, #tpu.memory_space<vmem>>, vector<1x1x128xf32>,
    return
  }
  func.func @transform_0(%arg0: i32, %arg1: memref<2xi32, #tpu.memory_space<smem>>) -> (i32, i32) {
    %c0_i32 = arith.constant 0 : i32
    %c0_i32_0 = arith.constant 0 : i32
    return %c0_i32, %arg0 : i32, i32
  }
  func.func @transform_1(%arg0: i32, %arg1: memref<2xi32, #tpu.memory_space<smem>>) -> (i32, i32, i32) {
    %c0_i32 = arith.constant 0 : i32
    %c0_i32_0 = arith.constant 0 : i32
    %c0_i32_1 = arith.constant 0 : i32
    return %arg0, %c0_i32, %c0_i32_0 : i32, i32, i32
  }
  func.func @transform_2(%arg0: i32, %arg1: memref<2xi32, #tpu.memory_space<smem>>) -> (i32, i32) {
    %c0_i32 = arith.constant 0 : i32
    %c0_i32_0 = arith.constant 0 : i32
    %c0_i32_1 = arith.constant 0 : i32
    return %c0_i32, %c0_i32_0 : i32, i32
  }
  func.func @transform_3(%arg0: i32, %arg1: memref<2xi32, #tpu.memory_space<smem>>) -> (i32, i32) {
    %c0_i32 = arith.constant 0 : i32
    %c0_i32_0 = arith.constant 0 : i32
    %c0_i32_1 = arith.constant 0 : i32
    return %c0_i32, %c0_i32_0 : i32, i32
  }
  func.func @transform_4(%arg0: i32, %arg1: memref<2xi32, #tpu.memory_space<smem>>) -> (i32, i32) {
    %c0_i32 = arith.constant 0 : i32
    %c0_i32_0 = arith.constant 0 : i32
    %c0_i32_1 = arith.constant 0 : i32
    return %c0_i32, %c0_i32_0 : i32, i32
  }
  func.func @transform_5(%arg0: i32, %arg1: memref<2xi32, #tpu.memory_space<smem>>) -> (i32, i32) {
    %c0_i32 = arith.constant 0 : i32
    %c0_i32_0 = arith.constant 0 : i32
    %c0_i32_1 = arith.constant 0 : i32
    return %c0_i32, %c0_i32_0 : i32, i32
  }
  func.func @transform_6(%arg0: i32, %arg1: memref<2xi32, #tpu.memory_space<smem>>) -> (i32, i32, i32) {
    %c0_i32 = arith.constant 0 : i32
    %c0_i32_0 = arith.constant 0 : i32
    %c0_i32_1 = arith.constant 0 : i32
    return %arg0, %c0_i32, %c0_i32_0 : i32, i32, i32
  }
  func.func @transform_7(%arg0: i32, %arg1: memref<2xi32, #tpu.memory_space<smem>>) -> (i32, i32, i32) {
    %c0_i32 = arith.constant 0 : i32
    %c0_i32_0 = arith.constant 0 : i32
    %c0_i32_1 = arith.constant 0 : i32
    return %arg0, %c0_i32, %c0_i32_0 : i32, i32, i32
  }
}

</mosaic_0001>

<llo_original>
// kernel: tpu_custom_call.1
$region0: #{tpu_custom_call.1}
  #allocation0 [shape = 'u32[]', space=smem, size = 0x4, offset = 0x4, fixed_abs, tag = 'smem constant byte address 0x4 - core index']
  #allocation1 [shape = 'u32[144,128]{1,0:T(1,128)}', space=vmem, size = 0x12000, scoped, tag = 'internal scratch']
  #allocation2 [shape = 's32[1]{0}', space=sflag, size = 0x4, scoped, tag = 'scoped memory for tpu_custom_call.1']
  #allocation3 [shape = 'u8[512]{0}', space=smem, size = 0x200, scoped, tag = 'prefetched SMEM operand 0']
  %s0 = inlined_call_operand.hbm [shape: s32[2], index: 0, kind: input, shape index: {}]
  %s1 = inlined_call_operand.hbm [shape: f32[8,512], index: 1, kind: input, shape index: {}]
  %s2 = inlined_call_operand.vmem [shape: f32[2,1,256], index: 2, kind: input, shape index: {}]
  %s3 = inlined_call_operand.hbm [shape: f32[256,256], index: 3, kind: input, shape index: {}]
  %s4 = inlined_call_operand.vmem [shape: f32[1,256], index: 4, kind: input, shape index: {}]
  %s5 = inlined_call_operand.hbm [shape: f32[256,128], index: 5, kind: input, shape index: {}]
  %s6 = inlined_call_operand.vmem [shape: f32[1,128], index: 6, kind: input, shape index: {}]
  %s7 = inlined_call_operand.hbm [shape: f32[2,1,128], index: 7, kind: output, shape index: {0}]
  %s8 = inlined_call_operand.hbm [shape: f32[2,1,8], index: 8, kind: output, shape index: {1}]
  %9 = xla_tuple %s7, %s8
  %s10 = sld [smem:[#allocation0]]
  $region77: #{tpu_custom_call.1} parent=0
    _
  %s12 = ssub.s32 1, %s10
  %s13 = scalar_select 0, %s12, %s10
  %15 = dma.hbm_to_smem %s0, 16, [#allocation3], [#allocation2]
  %16 = dma.done [#allocation2], 16
  %17 = sfence
  $region1: #{tpu_custom_call.1} parent=0
    #allocation4 [shape = 'u8[16384]{0}', space=vmem, size = 0x4000, scoped, tag = 'input window, operand 1']
    #allocation5 [shape = 's32[2]{0}', space=sflag, size = 0x8, scoped, tag = 'scoped memory for tpu_custom_call.1']
    #allocation6 [shape = 's32[2]{0}', space=sflag, size = 0x8, scoped, tag = 'scoped memory for tpu_custom_call.1']
    #allocation7 [shape = 'u8[262144]{0}', space=vmem, size = 0x40000, scoped, tag = 'input window, operand 3, single buffered']
    #allocation8 [shape = 's32[1]{0}', space=sflag, size = 0x4, scoped, tag = 'scoped memory for tpu_custom_call.1']
    #allocation9 [shape = 'u8[131072]{0}', space=vmem, size = 0x20000, scoped, tag = 'input window, operand 5, single buffered']
    #allocation10 [shape = 'u8[1024]{0}', space=vmem, size = 0x400, scoped, tag = 'output window, operand 0']
    #allocation11 [shape = 'u8[1024]{0}', space=vmem, size = 0x400, scoped, tag = 'output window, operand 1']
    #allocation12 [shape = 's32[2]{0}', space=sflag, size = 0x8, scoped, tag = 'scoped memory for tpu_custom_call.1']
    %18 = vsyncpa [#allocation5], 0
    %s19 = scalar_lea.sflag [#allocation5], 1
    %20 = vsyncpa %s19, 0
    %21 = vsyncpa [#allocation8], 0
    %22 = vsyncpa [#allocation6], 0
    %s23 = scalar_lea.sflag [#allocation6], 1
    %24 = vsyncpa %s23, 0
    %25 = vsyncpa [#allocation12], 0
    %s26 = scalar_lea.sflag [#allocation12], 1
    %27 = vsyncpa %s26, 0
    loop: start=0, step=1, limit=4
    $region2: #{tpu_custom_call.1} parent=1 // loop_pre_header
      _
    $region3: #{tpu_custom_call.1} parent=1 // loop_header
      %s29 = sphi 0, %s33
      %p30 = scmp.ge.s32.totalorder %s29, 4
      %s39 = sphi 0, %s41
      %s42 = sphi 0, %s39
      %s43 = sphi 0, %s42
      %s59 = sphi 0, %s43
      %s65 = sphi 0, %s67
      %s68 = sphi 0, %s65
      %s69 = sphi 0, %s68
      %s85 = sphi 0, %s69
      %s89 = sphi 0, %s89
      %s91 = sphi 0, %s89
      %s92 = sphi 0, %s91
      %s106 = sphi 0, %s92
      %s110 = sphi 0, %s110
      %s112 = sphi 0, %s110
      %s113 = sphi 0, %s112
      %s127 = sphi 0, %s113
      %s131 = sphi 0, %s131
      %s133 = sphi 0, %s131
      %s134 = sphi 0, %s133
      %s148 = sphi 0, %s134
      %s152 = sphi 0, %s152
      %s154 = sphi 0, %s152
      %s155 = sphi 0, %s154
      %s169 = sphi 0, %s155
      %s175 = sphi 0, %s177
      %s178 = sphi 0, %s175
      %s179 = sphi 0, %s178
      %s195 = sphi 0, %s179
      %s201 = sphi 0, %s203
      %s204 = sphi 0, %s201
      %s205 = sphi 0, %s204
      %s221 = sphi 0, %s205
    $region4: #{tpu_custom_call.1} parent=1 // loop_header_branch
      %32 = sbr.rel (%p30) target = $region8
    $region5: #{tpu_custom_call.1} parent=1 // loop_body
      %s34 = ssub.s32 %s29, 1
      %s35 = ssub.s32 %s29, 2
      %s36 = sadd.s32 %s29, 1
      %s37 = ssub.s32 %s29, %s36
      %p38 = scmp.eq.s32.totalorder %s37, 0
      %s40 = sadd.s32 %s39, 1
      %s41 = scalar_select %p38, %s39, %s40
      %p44 = pneg %p38
      %p45 = scmp.eq.s32.totalorder %s29, 1
      %p46 = por %p44, %p45
      %p47 = scmp.ne.s32.totalorder %s39, %s42
      %p48 = scmp.eq.s32.totalorder %s29, 0
      %p49 = por %p47, %p48
      %p50 = scmp.ne.s32.totalorder %s39, %s42
      %p51 = scmp.eq.s32.totalorder %s34, 1
      %p52 = por %p50, %p51
      %p53 = scmp.ne.s32.totalorder %s42, %s43
      %p54 = scmp.eq.s32.totalorder %s34, 0
      %p55 = por %p53, %p54
      %p56 = scmp.ne.s32.totalorder %s42, %s43
      %p57 = scmp.eq.s32.totalorder %s35, 1
      %p58 = por %p56, %p57
      %p60 = scmp.ne.s32.totalorder %s43, %s59
      %p61 = scmp.eq.s32.totalorder %s35, 0
      %p62 = por %p60, %p61
      %s63 = ssub.s32 %s29, %s36
      %p64 = scmp.eq.s32.totalorder %s63, 0
      %s66 = sadd.s32 %s65, 1
      %s67 = scalar_select %p64, %s65, %s66
      %p70 = pneg %p64
      %p71 = scmp.eq.s32.totalorder %s29, 1
      %p72 = por %p70, %p71
      %p73 = scmp.ne.s32.totalorder %s65, %s68
      %p74 = scmp.eq.s32.totalorder %s29, 0
      %p75 = por %p73, %p74
      %p76 = scmp.ne.s32.totalorder %s65, %s68
      %p77 = scmp.eq.s32.totalorder %s34, 1
      %p78 = por %p76, %p77
      %p79 = scmp.ne.s32.totalorder %s68, %s69
      %p80 = scmp.eq.s32.totalorder %s34, 0
      %p81 = por %p79, %p80
      %p82 = scmp.ne.s32.totalorder %s68, %s69
      %p83 = scmp.eq.s32.totalorder %s35, 1
      %p84 = por %p82, %p83
      %p86 = scmp.ne.s32.totalorder %s69, %s85
      %p87 = scmp.eq.s32.totalorder %s35, 0
      %p88 = por %p86, %p87
      %s90 = sadd.s32 %s89, 1
      %p93 = scmp.eq.s32.totalorder %s29, 1
      %p94 = scmp.ne.s32.totalorder %s89, %s91
      %p95 = scmp.eq.s32.totalorder %s29, 0
      %p96 = por %p94, %p95
      %p97 = scmp.ne.s32.totalorder %s89, %s91
      %p98 = scmp.eq.s32.totalorder %s34, 1
      %p99 = por %p97, %p98
      %p100 = scmp.ne.s32.totalorder %s91, %s92
      %p101 = scmp.eq.s32.totalorder %s34, 0
      %p102 = por %p100, %p101
      %p103 = scmp.ne.s32.totalorder %s91, %s92
      %p104 = scmp.eq.s32.totalorder %s35, 1
      %p105 = por %p103, %p104
      %p107 = scmp.ne.s32.totalorder %s92, %s106
      %p108 = scmp.eq.s32.totalorder %s35, 0
      %p109 = por %p107, %p108
      %s111 = sadd.s32 %s110, 1
      %p114 = scmp.eq.s32.totalorder %s29, 1
      %p115 = scmp.ne.s32.totalorder %s110, %s112
      %p116 = scmp.eq.s32.totalorder %s29, 0
      %p117 = por %p115, %p116
      %p118 = scmp.ne.s32.totalorder %s110, %s112
      %p119 = scmp.eq.s32.totalorder %s34, 1
      %p120 = por %p118, %p119
      %p121 = scmp.ne.s32.totalorder %s112, %s113
      %p122 = scmp.eq.s32.totalorder %s34, 0
      %p123 = por %p121, %p122
      %p124 = scmp.ne.s32.totalorder %s112, %s113
      %p125 = scmp.eq.s32.totalorder %s35, 1
      %p126 = por %p124, %p125
      %p128 = scmp.ne.s32.totalorder %s113, %s127
      %p129 = scmp.eq.s32.totalorder %s35, 0
      %p130 = por %p128, %p129
      %s132 = sadd.s32 %s131, 1
      %p135 = scmp.eq.s32.totalorder %s29, 1
      %p136 = scmp.ne.s32.totalorder %s131, %s133
      %p137 = scmp.eq.s32.totalorder %s29, 0
      %p138 = por %p136, %p137
      %p139 = scmp.ne.s32.totalorder %s131, %s133
      %p140 = scmp.eq.s32.totalorder %s34, 1
      %p141 = por %p139, %p140
      %p142 = scmp.ne.s32.totalorder %s133, %s134
      %p143 = scmp.eq.s32.totalorder %s34, 0
      %p144 = por %p142, %p143
      %p145 = scmp.ne.s32.totalorder %s133, %s134
      %p146 = scmp.eq.s32.totalorder %s35, 1
      %p147 = por %p145, %p146
      %p149 = scmp.ne.s32.totalorder %s134, %s148
      %p150 = scmp.eq.s32.totalorder %s35, 0
      %p151 = por %p149, %p150
      %s153 = sadd.s32 %s152, 1
      %p156 = scmp.eq.s32.totalorder %s29, 1
      %p157 = scmp.ne.s32.totalorder %s152, %s154
      %p158 = scmp.eq.s32.totalorder %s29, 0
      %p159 = por %p157, %p158
      %p160 = scmp.ne.s32.totalorder %s152, %s154
      %p161 = scmp.eq.s32.totalorder %s34, 1
      %p162 = por %p160, %p161
      %p163 = scmp.ne.s32.totalorder %s154, %s155
      %p164 = scmp.eq.s32.totalorder %s34, 0
      %p165 = por %p163, %p164
      %p166 = scmp.ne.s32.totalorder %s154, %s155
      %p167 = scmp.eq.s32.totalorder %s35, 1
      %p168 = por %p166, %p167
      %p170 = scmp.ne.s32.totalorder %s155, %s169
      %p171 = scmp.eq.s32.totalorder %s35, 0
      %p172 = por %p170, %p171
      %s173 = ssub.s32 %s29, %s36
      %p174 = scmp.eq.s32.totalorder %s173, 0
      %s176 = sadd.s32 %s175, 1
      %s177 = scalar_select %p174, %s175, %s176
      %p180 = pneg %p174
      %p181 = scmp.eq.s32.totalorder %s29, 1
      %p182 = por %p180, %p181
      %p183 = scmp.ne.s32.totalorder %s175, %s178
      %p184 = scmp.eq.s32.totalorder %s29, 0
      %p185 = por %p183, %p184
      %p186 = scmp.ne.s32.totalorder %s175, %s178
      %p187 = scmp.eq.s32.totalorder %s34, 1
      %p188 = por %p186, %p187
      %p189 = scmp.ne.s32.totalorder %s178, %s179
      %p190 = scmp.eq.s32.totalorder %s34, 0
      %p191 = por %p189, %p190
      %p192 = scmp.ne.s32.totalorder %s178, %s179
      %p193 = scmp.eq.s32.totalorder %s35, 1
      %p194 = por %p192, %p193
      %p196 = scmp.ne.s32.totalorder %s179, %s195
      %p197 = scmp.eq.s32.totalorder %s35, 0
      %p198 = por %p196, %p197
      %s199 = ssub.s32 %s29, %s36
      %p200 = scmp.eq.s32.totalorder %s199, 0
      %s202 = sadd.s32 %s201, 1
      %s203 = scalar_select %p200, %s201, %s202
      %p206 = pneg %p200
      %p207 = scmp.eq.s32.totalorder %s29, 1
      %p208 = por %p206, %p207
      %p209 = scmp.ne.s32.totalorder %s201, %s204
      %p210 = scmp.eq.s32.totalorder %s29, 0
      %p211 = por %p209, %p210
      %p212 = scmp.ne.s32.totalorder %s201, %s204
      %p213 = scmp.eq.s32.totalorder %s34, 1
      %p214 = por %p212, %p213
      %p215 = scmp.ne.s32.totalorder %s204, %s205
      %p216 = scmp.eq.s32.totalorder %s34, 0
      %p217 = por %p215, %p216
      %p218 = scmp.ne.s32.totalorder %s204, %s205
      %p219 = scmp.eq.s32.totalorder %s35, 1
      %p220 = por %p218, %p219
      %p222 = scmp.ne.s32.totalorder %s205, %s221
      %p223 = scmp.eq.s32.totalorder %s35, 0
      %p224 = por %p222, %p223
      %p225 = scmp.le.s32.totalorder 1, %s29
      %p226 = scmp.lt.s32.totalorder %s29, 3
      %p227 = pnand %p225, %p226
      %p228 = pneg %p227
      // Predicated region
      $region9: #{tpu_custom_call.1} parent=5 // pred_check
        _
      $region10: #{tpu_custom_call.1} parent=5 // pred_check_branch
        %230 = sbr.rel (%p227) target = $region12
      $region11: #{tpu_custom_call.1} parent=5 // pred_region
        %s231 = ssub.s32 %s29, 1
        // Predicated region
        $region13: #{tpu_custom_call.1} parent=11 // pred_check
          %p232 = pneg %p102
        $region14: #{tpu_custom_call.1} parent=11 // pred_check_branch
          %234 = sbr.rel (%p232) target = $region16
        $region15: #{tpu_custom_call.1} parent=11 // pred_region
          %s236 = ssub.s32 8192, 8192
          %237 = vsyncadd [#allocation8], %s236
          %s238 = sshll.u32 [#allocation7], 4
          %s239 = int_to_ptr.vmem [resolvable:$true] %s238
          %244 = dma.hbm_to_vmem [thread:$0]  %s3, 8192, %s239, [#allocation8], 256, 256, 16
        $region16: #{tpu_custom_call.1} parent=11 // pred_fallthru
          _
        // Predicated region
        $region17: #{tpu_custom_call.1} parent=11 // pred_check
          %p245 = pneg %p123
        $region18: #{tpu_custom_call.1} parent=11 // pred_check_branch
          %247 = sbr.rel (%p245) target = $region20
        $region19: #{tpu_custom_call.1} parent=11 // pred_region
          _
        $region20: #{tpu_custom_call.1} parent=11 // pred_fallthru
          _
        // Predicated region
        $region21: #{tpu_custom_call.1} parent=11 // pred_check
          %p248 = pneg %p144
        $region22: #{tpu_custom_call.1} parent=11 // pred_check_branch
          %250 = sbr.rel (%p248) target = $region24
        $region23: #{tpu_custom_call.1} parent=11 // pred_region
          %s252 = ssub.s32 4096, 4096
          %253 = vsyncadd [#allocation8], %s252
          %s254 = sshll.u32 [#allocation9], 4
          %s255 = int_to_ptr.vmem [resolvable:$true] %s254
          %260 = dma.hbm_to_vmem [thread:$0]  %s5, 4096, %s255, [#allocation8], 128, 128, 8
        $region24: #{tpu_custom_call.1} parent=11 // pred_fallthru
          _
        // Predicated region
        $region25: #{tpu_custom_call.1} parent=11 // pred_check
          %p261 = pneg %p165
        $region26: #{tpu_custom_call.1} parent=11 // pred_check_branch
          %263 = sbr.rel (%p261) target = $region28
        $region27: #{tpu_custom_call.1} parent=11 // pred_region
          _
        $region28: #{tpu_custom_call.1} parent=11 // pred_fallthru
          _
      $region12: #{tpu_custom_call.1} parent=5 // pred_fallthru
        _
      %p264 = scmp.lt.s32.totalorder %s29, 2
      // Predicated region
      $region29: #{tpu_custom_call.1} parent=5 // pred_check
        %p265 = pneg %p264
      $region30: #{tpu_custom_call.1} parent=5 // pred_check_branch
        %267 = sbr.rel (%p265) target = $region32
      $region31: #{tpu_custom_call.1} parent=5 // pred_region
        // Predicated region
        $region33: #{tpu_custom_call.1} parent=31 // pred_check
          %p268 = pneg %p49
        $region34: #{tpu_custom_call.1} parent=31 // pred_check_branch
          %270 = sbr.rel (%p268) target = $region36
        $region35: #{tpu_custom_call.1} parent=31 // pred_region
          %s271 = sand.u32 %s39, 1
          %s272 = scalar_lea.sflag [#allocation5], %s271
          %s273 = sand.u32 %s39, 1
          %s274 = smul.addr %s273, 16
          %s275 = scalar_lea.vmem [#allocation4], %s274
          %s276 = smul.u32 2, %s29
          %s278 = ssub.s32 256, 256
          %279 = vsyncadd %s272, %s278
          %s280 = smul.addr %s276, 128
          %s281 = scalar_lea.hbm %s1, %s280
          %s283 = sshll.u32 %s275, 4
          %s284 = int_to_ptr.vmem [resolvable:$true] %s283
          %286 = dma.hbm_to_vmem [thread:$0]  %s281, 256, %s284, %s272
        $region36: #{tpu_custom_call.1} parent=31 // pred_fallthru
          _
        // Predicated region
        $region37: #{tpu_custom_call.1} parent=31 // pred_check
          %p287 = pneg %p75
        $region38: #{tpu_custom_call.1} parent=31 // pred_check_branch
          %289 = sbr.rel (%p287) target = $region40
        $region39: #{tpu_custom_call.1} parent=31 // pred_region
          %p290 = scmp.lt.s32.totalorder %s29, 1
          %s291 = scalar_select %p290, %s29, 1
          %s292 = smul.addr %s291, 2
          %s293 = scalar_lea.vmem %s2, %s292
        $region40: #{tpu_custom_call.1} parent=31 // pred_fallthru
          _
      $region32: #{tpu_custom_call.1} parent=5 // pred_fallthru
        _
      %p294 = scmp.le.s32.totalorder 1, %s29
      %p295 = scmp.lt.s32.totalorder %s29, 3
      %p296 = pnand %p294, %p295
      %p297 = pneg %p296
      // Predicated region
      $region41: #{tpu_custom_call.1} parent=5 // pred_check
        _
      $region42: #{tpu_custom_call.1} parent=5 // pred_check_branch
        %299 = sbr.rel (%p296) target = $region44
      $region43: #{tpu_custom_call.1} parent=5 // pred_region
        %s300 = ssub.s32 %s29, 1
        %s301 = sand.u32 %s42, 1
        %s302 = scalar_lea.sflag [#allocation5], %s301
        %s303 = sand.u32 %s42, 1
        %s304 = smul.addr %s303, 16
        %s305 = scalar_lea.vmem [#allocation4], %s304
        // Predicated region
        $region45: #{tpu_custom_call.1} parent=43 // pred_check
          %p306 = pneg %p55
        $region46: #{tpu_custom_call.1} parent=43 // pred_check_branch
          %308 = sbr.rel (%p306) target = $region48
        $region47: #{tpu_custom_call.1} parent=43 // pred_region
          %309 = dma.done %s302, 256
        $region48: #{tpu_custom_call.1} parent=43 // pred_fallthru
          _
        // Predicated region
        $region49: #{tpu_custom_call.1} parent=43 // pred_check
          %p310 = pneg %p102
        $region50: #{tpu_custom_call.1} parent=43 // pred_check_branch
          %312 = sbr.rel (%p310) target = $region52
        $region51: #{tpu_custom_call.1} parent=43 // pred_region
          %313 = dma.done [#allocation8], 8192
        $region52: #{tpu_custom_call.1} parent=43 // pred_fallthru
          _
        // Predicated region
        $region53: #{tpu_custom_call.1} parent=43 // pred_check
          %p314 = pneg %p144
        $region54: #{tpu_custom_call.1} parent=43 // pred_check_branch
          %316 = sbr.rel (%p314) target = $region56
        $region55: #{tpu_custom_call.1} parent=43 // pred_region
          %317 = dma.done [#allocation8], 4096
        $region56: #{tpu_custom_call.1} parent=43 // pred_fallthru
          _
        %s318 = sand.u32 %s42, 1
        %s319 = scalar_lea.sflag [#allocation5], %s318
        %s320 = sand.u32 %s42, 1
        %s321 = smul.addr %s320, 16
        %s322 = scalar_lea.vmem [#allocation4], %s321
        %p323 = pneg %p55
        %p324 = pneg %p52
        %p325 = scmp.lt.s32.totalorder %s34, 1
        %s326 = scalar_select %p325, %s34, 1
        %s327 = smul.addr %s326, 2
        %s328 = scalar_lea.vmem %s2, %s327
        %p329 = pneg %p81
        %p330 = pneg %p78
        %p331 = pneg %p102
        %p332 = pneg %p99
        %p333 = pneg %p123
        %p334 = pneg %p120
        %p335 = pneg %p144
        %p336 = pneg %p141
        %p337 = pneg %p165
        %p338 = pneg %p162
        %p339 = pneg %p191
        %p340 = pneg %p188
        %s341 = sand.u32 %s178, 1
        %s342 = scalar_lea.sflag [#allocation6], %s341
        %s343 = sand.u32 %s178, 1
        %s344 = scalar_lea.vmem [#allocation10], %s343
        %p345 = pneg %p217
        %p346 = pneg %p214
        %s347 = sand.u32 %s204, 1
        %s348 = scalar_lea.sflag [#allocation12], %s347
        %s349 = sand.u32 %s204, 1
        %s350 = scalar_lea.vmem [#allocation11], %s349
        %s351 = smul.u32 2, %s34
        %p352 = scmp.lt.s32.totalorder %s34, 1
        %s353 = scalar_select %p352, %s34, 1
        %s354 = smul.addr %s353, 2
        %s355 = scalar_lea.vmem %s2, %s354
        %v356 = vld [vmem:[%s305] sm:$0xff]
        %v357 = vld [vmem:[%s305 + $0x8] sm:$0xff]
        %v358 = vld [vmem:[#allocation7] sm:$0xff]
        %v359 = vld [vmem:[#allocation7 + $0x8] sm:$0xff]
        %v360 = vld [vmem:[#allocation7 + $0x10] sm:$0xff]
        %v361 = vld [vmem:[#allocation7 + $0x18] sm:$0xff]
        %v362 = vld [vmem:[#allocation7 + $0x20] sm:$0xff]
        %v363 = vld [vmem:[#allocation7 + $0x28] sm:$0xff]
        %v364 = vld [vmem:[#allocation7 + $0x30] sm:$0xff]
        %v365 = vld [vmem:[#allocation7 + $0x38] sm:$0xff]
        %v366 = vld [vmem:[#allocation7 + $0x40] sm:$0xff]
        %v367 = vld [vmem:[#allocation7 + $0x48] sm:$0xff]
        %v368 = vld [vmem:[#allocation7 + $0x50] sm:$0xff]
        %v369 = vld [vmem:[#allocation7 + $0x58] sm:$0xff]
        %v370 = vld [vmem:[#allocation7 + $0x60] sm:$0xff]
        %v371 = vld [vmem:[#allocation7 + $0x68] sm:$0xff]
        %v372 = vld [vmem:[#allocation7 + $0x70] sm:$0xff]
        %v373 = vld [vmem:[#allocation7 + $0x78] sm:$0xff]
        %v374 = vld [vmem:[#allocation7 + $0x80] sm:$0xff]
        %v375 = vld [vmem:[#allocation7 + $0x88] sm:$0xff]
        %v376 = vld [vmem:[#allocation7 + $0x90] sm:$0xff]
        %v377 = vld [vmem:[#allocation7 + $0x98] sm:$0xff]
        %v378 = vld [vmem:[#allocation7 + $0xa0] sm:$0xff]
        %v379 = vld [vmem:[#allocation7 + $0xa8] sm:$0xff]
        %v380 = vld [vmem:[#allocation7 + $0xb0] sm:$0xff]
        %v381 = vld [vmem:[#allocation7 + $0xb8] sm:$0xff]
        %v382 = vld [vmem:[#allocation7 + $0xc0] sm:$0xff]
        %v383 = vld [vmem:[#allocation7 + $0xc8] sm:$0xff]
        %v384 = vld [vmem:[#allocation7 + $0xd0] sm:$0xff]
        %v385 = vld [vmem:[#allocation7 + $0xd8] sm:$0xff]
        %v386 = vld [vmem:[#allocation7 + $0xe0] sm:$0xff]
        %v387 = vld [vmem:[#allocation7 + $0xe8] sm:$0xff]
        %v388 = vld [vmem:[#allocation7 + $0xf0] sm:$0xff]
        %v389 = vld [vmem:[#allocation7 + $0xf8] sm:$0xff]
        %v390 = vld [vmem:[#allocation7 + $0x100] sm:$0xff]
        %v391 = vld [vmem:[#allocation7 + $0x108] sm:$0xff]
        %v392 = vld [vmem:[#allocation7 + $0x110] sm:$0xff]
        %v393 = vld [vmem:[#allocation7 + $0x118] sm:$0xff]
        %v394 = vld [vmem:[#allocation7 + $0x120] sm:$0xff]
        %v395 = vld [vmem:[#allocation7 + $0x128] sm:$0xff]
        %v396 = vld [vmem:[#allocation7 + $0x130] sm:$0xff]
        %v397 = vld [vmem:[#allocation7 + $0x138] sm:$0xff]
        %v398 = vld [vmem:[#allocation7 + $0x140] sm:$0xff]
        %v399 = vld [vmem:[#allocation7 + $0x148] sm:$0xff]
        %v400 = vld [vmem:[#allocation7 + $0x150] sm:$0xff]
        %v401 = vld [vmem:[#allocation7 + $0x158] sm:$0xff]
        %v402 = vld [vmem:[#allocation7 + $0x160] sm:$0xff]
        %v403 = vld [vmem:[#allocation7 + $0x168] sm:$0xff]
        %v404 = vld [vmem:[#allocation7 + $0x170] sm:$0xff]
        %v405 = vld [vmem:[#allocation7 + $0x178] sm:$0xff]
        %v406 = vld [vmem:[#allocation7 + $0x180] sm:$0xff]
        %v407 = vld [vmem:[#allocation7 + $0x188] sm:$0xff]
        %v408 = vld [vmem:[#allocation7 + $0x190] sm:$0xff]
        %v409 = vld [vmem:[#allocation7 + $0x198] sm:$0xff]
        %v410 = vld [vmem:[#allocation7 + $0x1a0] sm:$0xff]
        %v411 = vld [vmem:[#allocation7 + $0x1a8] sm:$0xff]
        %v412 = vld [vmem:[#allocation7 + $0x1b0] sm:$0xff]
        %v413 = vld [vmem:[#allocation7 + $0x1b8] sm:$0xff]
        %v414 = vld [vmem:[#allocation7 + $0x1c0] sm:$0xff]
        %v415 = vld [vmem:[#allocation7 + $0x1c8] sm:$0xff]
        %v416 = vld [vmem:[#allocation7 + $0x1d0] sm:$0xff]
        %v417 = vld [vmem:[#allocation7 + $0x1d8] sm:$0xff]
        %v418 = vld [vmem:[#allocation7 + $0x1e0] sm:$0xff]
        %v419 = vld [vmem:[#allocation7 + $0x1e8] sm:$0xff]
        %v420 = vld [vmem:[#allocation7 + $0x1f0] sm:$0xff]
        %v421 = vld [vmem:[#allocation7 + $0x1f8] sm:$0xff]
        %v422 = vld [vmem:[%s4] sm:$0x3]
        %v424 = vlaneseq
        %v425 = vshrl.u32 %v424, 7
        %v426 = vsub.s32 0, %v425
        %v427 = vrot.slane %v422, %v426
        %v428 = vlaneseq
        %v429 = vshrl.u32 %v428, 7
        %v430 = vsub.s32 1, %v429
        %v431 = vrot.slane %v422, %v430
        %434 = vmatprep.subr.mxu0 %v359
        %435 = vmatpush1.msra.mxu0 %v358
        %436 = vmatprep.subr.mxu0 %v361
        %437 = vmatpush1.msra.mxu0 %v360
        %438 = vmatprep.subr.mxu0 %v363
        %439 = vmatpush1.msra.mxu0 %v362
        %440 = vmatprep.subr.mxu0 %v365
        %441 = vmatpush1.msra.mxu0 %v364
        %442 = vmatprep.subr.mxu0 %v367
        %443 = vmatpush1.msra.mxu0 %v366
        %444 = vmatprep.subr.mxu0 %v369
        %445 = vmatpush1.msra.mxu0 %v368
        %446 = vmatprep.subr.mxu0 %v371
        %447 = vmatpush1.msra.mxu0 %v370
        %448 = vmatprep.subr.mxu0 %v373
        %449 = vmatpush1.msra.mxu0 %v372
        %450 = vmatprep.subr.mxu0 %v375
        %451 = vmatpush1.msra.mxu0 %v374
        %452 = vmatprep.subr.mxu0 %v377
        %453 = vmatpush1.msra.mxu0 %v376
        %454 = vmatprep.subr.mxu0 %v379
        %455 = vmatpush1.msra.mxu0 %v378
        %456 = vmatprep.subr.mxu0 %v381
        %457 = vmatpush1.msra.mxu0 %v380
        %458 = vmatprep.subr.mxu0 %v383
        %459 = vmatpush1.msra.mxu0 %v382
        %460 = vmatprep.subr.mxu0 %v385
        %461 = vmatpush1.msra.mxu0 %v384
        %462 = vmatprep.subr.mxu0 %v387
        %463 = vmatpush1.msra.mxu0 %v386
        %464 = vmatprep.subr.mxu0 %v389
        %465 = vmatpush1.msra.mxu0 %v388
        %466 = vmatprep.subr.mxu0 %v391
        %467 = vmatpush1.msra.mxu0 %v390
        %468 = vmatprep.subr.mxu0 %v393
        %469 = vmatpush1.msra.mxu0 %v392
        %470 = vmatprep.subr.mxu0 %v395
        %471 = vmatpush1.msra.mxu0 %v394
        %472 = vmatprep.subr.mxu0 %v397
        %473 = vmatpush1.msra.mxu0 %v396
        %474 = vmatprep.subr.mxu0 %v399
        %475 = vmatpush1.msra.mxu0 %v398
        %476 = vmatprep.subr.mxu0 %v401
        %477 = vmatpush1.msra.mxu0 %v400
        %478 = vmatprep.subr.mxu0 %v403
        %479 = vmatpush1.msra.mxu0 %v402
        %480 = vmatprep.subr.mxu0 %v405
        %481 = vmatpush1.msra.mxu0 %v404
        %482 = vmatprep.subr.mxu0 %v407
        %483 = vmatpush1.msra.mxu0 %v406
        %484 = vmatprep.subr.mxu0 %v409
        %485 = vmatpush1.msra.mxu0 %v408
        %486 = vmatprep.subr.mxu0 %v411
        %487 = vmatpush1.msra.mxu0 %v410
        %488 = vmatprep.subr.mxu0 %v413
        %489 = vmatpush1.msra.mxu0 %v412
        %490 = vmatprep.subr.mxu0 %v415
        %491 = vmatpush1.msra.mxu0 %v414
        %492 = vmatprep.subr.mxu0 %v417
        %493 = vmatpush1.msra.mxu0 %v416
        %494 = vmatprep.subr.mxu0 %v419
        %495 = vmatpush1.msra.mxu0 %v418
        %496 = vmatprep.subr.mxu0 %v421
        %497 = vmatpush1.msra.mxu0 %v420
        %498 = vmatprep.mubr.f32.mxu0 %v357
        %499 = vmatmul.mubr.f32.gmra.mrb[0].mxu0 %v356
        %v500 = vpop.f32.mrb[0].mxu0
        %v501 = vadd.f32 %v427, %v500
        %v502 = vpop.f32.mrb[0].mxu0
        %v503 = vadd.f32 %v431, %v502
        %504 = vdwg.mxu0
        %v505 = vmax.f32 %v501, 0.0
        %v506 = vmax.f32 %v503, 0.0
        %v507 = vld [vmem:[%s355] sm:$0x3]
        %v508 = vld [vmem:[#allocation9] sm:$0xff]
        %v509 = vld [vmem:[#allocation9 + $0x8] sm:$0xff]
        %v510 = vld [vmem:[#allocation9 + $0x10] sm:$0xff]
        %v511 = vld [vmem:[#allocation9 + $0x18] sm:$0xff]
        %v512 = vld [vmem:[#allocation9 + $0x20] sm:$0xff]
        %v513 = vld [vmem:[#allocation9 + $0x28] sm:$0xff]
        %v514 = vld [vmem:[#allocation9 + $0x30] sm:$0xff]
        %v515 = vld [vmem:[#allocation9 + $0x38] sm:$0xff]
        %v516 = vld [vmem:[#allocation9 + $0x40] sm:$0xff]
        %v517 = vld [vmem:[#allocation9 + $0x48] sm:$0xff]
        %v518 = vld [vmem:[#allocation9 + $0x50] sm:$0xff]
        %v519 = vld [vmem:[#allocation9 + $0x58] sm:$0xff]
        %v520 = vld [vmem:[#allocation9 + $0x60] sm:$0xff]
        %v521 = vld [vmem:[#allocation9 + $0x68] sm:$0xff]
        %v522 = vld [vmem:[#allocation9 + $0x70] sm:$0xff]
        %v523 = vld [vmem:[#allocation9 + $0x78] sm:$0xff]
        %v524 = vld [vmem:[#allocation9 + $0x80] sm:$0xff]
        %v525 = vld [vmem:[#allocation9 + $0x88] sm:$0xff]
        %v526 = vld [vmem:[#allocation9 + $0x90] sm:$0xff]
        %v527 = vld [vmem:[#allocation9 + $0x98] sm:$0xff]
        %v528 = vld [vmem:[#allocation9 + $0xa0] sm:$0xff]
        %v529 = vld [vmem:[#allocation9 + $0xa8] sm:$0xff]
        %v530 = vld [vmem:[#allocation9 + $0xb0] sm:$0xff]
        %v531 = vld [vmem:[#allocation9 + $0xb8] sm:$0xff]
        %v532 = vld [vmem:[#allocation9 + $0xc0] sm:$0xff]
        %v533 = vld [vmem:[#allocation9 + $0xc8] sm:$0xff]
        %v534 = vld [vmem:[#allocation9 + $0xd0] sm:$0xff]
        %v535 = vld [vmem:[#allocation9 + $0xd8] sm:$0xff]
        %v536 = vld [vmem:[#allocation9 + $0xe0] sm:$0xff]
        %v537 = vld [vmem:[#allocation9 + $0xe8] sm:$0xff]
        %v538 = vld [vmem:[#allocation9 + $0xf0] sm:$0xff]
        %v539 = vld [vmem:[#allocation9 + $0xf8] sm:$0xff]
        %v540 = vld [vmem:[%s6] sm:$0x1]
        %v542 = vlaneseq
        %v543 = vshrl.u32 %v542, 7
        %v544 = vsub.s32 0, %v543
        %v545 = vrot.slane %v507, %v544
        %v546 = vlaneseq
        %v547 = vshrl.u32 %v546, 7
        %v548 = vsub.s32 1, %v547
        %v549 = vrot.slane %v507, %v548
        %552 = vmatprep.subr.mxu0 0.0
        %553 = vmatpush1.msra.mxu0 %v508
        %554 = vmatprep.subr.mxu0 0.0
        %555 = vmatpush1.msra.mxu0 %v509
        %556 = vmatprep.subr.mxu0 0.0
        %557 = vmatpush1.msra.mxu0 %v510
        %558 = vmatprep.subr.mxu0 0.0
        %559 = vmatpush1.msra.mxu0 %v511
        %560 = vmatprep.subr.mxu0 0.0
        %561 = vmatpush1.msra.mxu0 %v512
        %562 = vmatprep.subr.mxu0 0.0
        %563 = vmatpush1.msra.mxu0 %v513
        %564 = vmatprep.subr.mxu0 0.0
        %565 = vmatpush1.msra.mxu0 %v514
        %566 = vmatprep.subr.mxu0 0.0
        %567 = vmatpush1.msra.mxu0 %v515
        %568 = vmatprep.subr.mxu0 0.0
        %569 = vmatpush1.msra.mxu0 %v516
        %570 = vmatprep.subr.mxu0 0.0
        %571 = vmatpush1.msra.mxu0 %v517
        %572 = vmatprep.subr.mxu0 0.0
        %573 = vmatpush1.msra.mxu0 %v518
        %574 = vmatprep.subr.mxu0 0.0
        %575 = vmatpush1.msra.mxu0 %v519
        %576 = vmatprep.subr.mxu0 0.0
        %577 = vmatpush1.msra.mxu0 %v520
        %578 = vmatprep.subr.mxu0 0.0
        %579 = vmatpush1.msra.mxu0 %v521
        %580 = vmatprep.subr.mxu0 0.0
        %581 = vmatpush1.msra.mxu0 %v522
        %582 = vmatprep.subr.mxu0 0.0
        %583 = vmatpush1.msra.mxu0 %v523
        %584 = vmatprep.subr.mxu0 0.0
        %585 = vmatpush1.msra.mxu0 %v524
        %586 = vmatprep.subr.mxu0 0.0
        %587 = vmatpush1.msra.mxu0 %v525
        %588 = vmatprep.subr.mxu0 0.0
        %589 = vmatpush1.msra.mxu0 %v526
        %590 = vmatprep.subr.mxu0 0.0
        %591 = vmatpush1.msra.mxu0 %v527
        %592 = vmatprep.subr.mxu0 0.0
        %593 = vmatpush1.msra.mxu0 %v528
        %594 = vmatprep.subr.mxu0 0.0
        %595 = vmatpush1.msra.mxu0 %v529
        %596 = vmatprep.subr.mxu0 0.0
        %597 = vmatpush1.msra.mxu0 %v530
        %598 = vmatprep.subr.mxu0 0.0
        %599 = vmatpush1.msra.mxu0 %v531
        %600 = vmatprep.subr.mxu0 0.0
        %601 = vmatpush1.msra.mxu0 %v532
        %602 = vmatprep.subr.mxu0 0.0
        %603 = vmatpush1.msra.mxu0 %v533
        %604 = vmatprep.subr.mxu0 0.0
        %605 = vmatpush1.msra.mxu0 %v534
        %606 = vmatprep.subr.mxu0 0.0
        %607 = vmatpush1.msra.mxu0 %v535
        %608 = vmatprep.subr.mxu0 0.0
        %609 = vmatpush1.msra.mxu0 %v536
        %610 = vmatprep.subr.mxu0 0.0
        %611 = vmatpush1.msra.mxu0 %v537
        %612 = vmatprep.subr.mxu0 0.0
        %613 = vmatpush1.msra.mxu0 %v538
        %614 = vmatprep.subr.mxu0 0.0
        %615 = vmatpush1.msra.mxu0 %v539
        %616 = vmatprep.mubr.f32.mxu0 %v549
        %617 = vmatmul.mubr.f32.gmra.mrb[0].mxu0 %v545
        %v618 = vpop.f32.mrb[0].mxu0
        %v619 = vadd.f32 %v540, %v618
        %v620 = vpop.f32.mrb[0].mxu0
        %621 = vdwg.mxu0
        %v622 = vmax.f32 %v619, 0.0
        %v623 = vlaneseq
        %v624 = vand.u32 %v623, 127
        %s625 = sld [smem:[#allocation3 + %s34]]
        %v626 = vstv %s625
        %vm627 = vcmp.ge.s32.totalorder %v624, %v626
        %v628 = vsel %vm627, -100.0, 0.0
        %629 = vmatprep.subr.mxu0 0.0
        %630 = vmatpush1.xpose.msra.mxu0 %v505
        %631 = vmatprep.subr.mxu0 0.0
        %632 = vmatpush1.xpose.msra.mxu0 0.0
        %633 = vmatprep.subr.mxu0 0.0
        %634 = vmatpush1.xpose.msra.mxu0 0.0
        %635 = vmatprep.subr.mxu0 0.0
        %636 = vmatpush1.xpose.msra.mxu0 0.0
        %637 = vmatprep.subr.mxu0 0.0
        %638 = vmatpush1.xpose.msra.mxu0 0.0
        %639 = vmatprep.subr.mxu0 0.0
        %640 = vmatpush1.xpose.msra.mxu0 0.0
        %641 = vmatprep.subr.mxu0 0.0
        %642 = vmatpush1.xpose.msra.mxu0 0.0
        %643 = vmatprep.subr.mxu0 0.0
        %644 = vmatpush1.xpose.msra.mxu0 0.0
        %645 = vmatprep.subr.mxu0 0.0
        %646 = vmatpush1.xpose.msra.mxu0 0.0
        %647 = vmatprep.subr.mxu0 0.0
        %648 = vmatpush1.xpose.msra.mxu0 0.0
        %649 = vmatprep.subr.mxu0 0.0
        %650 = vmatpush1.xpose.msra.mxu0 0.0
        %651 = vmatprep.subr.mxu0 0.0
        %652 = vmatpush1.xpose.msra.mxu0 0.0
        %653 = vmatprep.subr.mxu0 0.0
        %654 = vmatpush1.xpose.msra.mxu0 0.0
        %655 = vmatprep.subr.mxu0 0.0
        %656 = vmatpush1.xpose.msra.mxu0 0.0
        %657 = vmatprep.subr.mxu0 0.0
        %658 = vmatpush1.xpose.msra.mxu0 0.0
        %659 = vmatprep.subr.mxu0 0.0
        %660 = vmatpush1.xpose.msra.mxu0 0.0
        %661 = vmatprep.subr.mxu0 0.0
        %662 = vmatpush1.xpose.msra.mxu0 0.0
        %663 = vmatprep.subr.mxu0 0.0
        %664 = vmatpush1.xpose.msra.mxu0 0.0
        %665 = vmatprep.subr.mxu0 0.0
        %666 = vmatpush1.xpose.msra.mxu0 0.0
        %667 = vmatprep.subr.mxu0 0.0
        %668 = vmatpush1.xpose.msra.mxu0 0.0
        %669 = vmatprep.subr.mxu0 0.0
        %670 = vmatpush1.xpose.msra.mxu0 0.0
        %671 = vmatprep.subr.mxu0 0.0
        %672 = vmatpush1.xpose.msra.mxu0 0.0
        %673 = vmatprep.subr.mxu0 0.0
        %674 = vmatpush1.xpose.msra.mxu0 0.0
        %675 = vmatprep.subr.mxu0 0.0
        %676 = vmatpush1.xpose.msra.mxu0 0.0
        %677 = vmatprep.subr.mxu0 0.0
        %678 = vmatpush1.xpose.msra.mxu0 0.0
        %679 = vmatprep.subr.mxu0 0.0
        %680 = vmatpush1.xpose.msra.mxu0 0.0
        %681 = vmatprep.subr.mxu0 0.0
        %682 = vmatpush1.xpose.msra.mxu0 0.0
        %683 = vmatprep.subr.mxu0 0.0
        %684 = vmatpush1.xpose.msra.mxu0 0.0
        %685 = vmatprep.subr.mxu0 0.0
        %686 = vmatpush1.xpose.msra.mxu0 0.0
        %687 = vmatprep.subr.mxu0 0.0
        %688 = vmatpush1.xpose.msra.mxu0 0.0
        %689 = vmatprep.subr.mxu0 0.0
        %690 = vmatpush1.xpose.msra.mxu0 0.0
        %691 = vmatprep.subr.mxu0 0.0
        %692 = vmatpush1.xpose.msra.mxu0 0.0
        %693 = vmatprep.mubr.f32.mxu0 0.0
        %694 = vmatmul.mubr.f32.gmra.mrb[0].mxu0 %v622
        %v695 = vpop.f32.mrb[0].mxu0
        %v696 = vadd.f32 %v628, %v695
        %v697 = vpop.f32.mrb[0].mxu0
        %698 = vdwg.mxu0
        %vm699 = vcmask 57344
        %v700 = vsel %vm699, %v696, -inf
        %701 = vmax.xlane.f32.xlu0 %v700
        %v702 = vpop.xlane.xlu0 %701
        %v703 = vsub.f32 %v696, %v702
        %v704 = vmul.f32 %v703, 1.442695
        %v705 = vpow.pop %v704
        %v706 = vsel %vm699, %v705, 0.0
        %707 = vadd.xlane.f32.xlu0 %v706
        %v708 = vpop.xlane.xlu0 %707
        %v709 = vrcp.pop %v708
        %v710 = vmul.f32 %v705, %v709
        %vm711 = vcmask 64512
        %v713 = vsel %vm711, %v710, 0
        %715 = vmatprep.subr.mxu0 0.0
        %716 = vmatpush1.msra.mxu0 %v506
        %717 = vmatprep.subr.mxu0 0.0
        %718 = vmatpush1.msra.mxu0 0.0
        %719 = vmatprep.subr.mxu0 0.0
        %720 = vmatpush1.msra.mxu0 0.0
        %721 = vmatprep.subr.mxu0 0.0
        %722 = vmatpush1.msra.mxu0 0.0
        %723 = vmatprep.subr.mxu0 0.0
        %724 = vmatpush1.msra.mxu0 0.0
        %725 = vmatprep.subr.mxu0 0.0
        %726 = vmatpush1.msra.mxu0 0.0
        %727 = vmatprep.subr.mxu0 0.0
        %728 = vmatpush1.msra.mxu0 0.0
        %729 = vmatprep.subr.mxu0 0.0
        %730 = vmatpush1.msra.mxu0 0.0
        %731 = vmatprep.subr.mxu0 0.0
        %732 = vmatpush1.msra.mxu0 0.0
        %733 = vmatprep.subr.mxu0 0.0
        %734 = vmatpush1.msra.mxu0 0.0
        %735 = vmatprep.subr.mxu0 0.0
        %736 = vmatpush1.msra.mxu0 0.0
        %737 = vmatprep.subr.mxu0 0.0
        %738 = vmatpush1.msra.mxu0 0.0
        %739 = vmatprep.subr.mxu0 0.0
        %740 = vmatpush1.msra.mxu0 0.0
        %741 = vmatprep.subr.mxu0 0.0
        %742 = vmatpush1.msra.mxu0 0.0
        %743 = vmatprep.subr.mxu0 0.0
        %744 = vmatpush1.msra.mxu0 0.0
        %745 = vmatprep.subr.mxu0 0.0
        %746 = vmatpush1.msra.mxu0 0.0
        %747 = vmatprep.subr.mxu0 0.0
        %748 = vmatpush1.msra.mxu0 0.0
        %749 = vmatprep.subr.mxu0 0.0
        %750 = vmatpush1.msra.mxu0 0.0
        %751 = vmatprep.subr.mxu0 0.0
        %752 = vmatpush1.msra.mxu0 0.0
        %753 = vmatprep.subr.mxu0 0.0
        %754 = vmatpush1.msra.mxu0 0.0
        %755 = vmatprep.subr.mxu0 0.0
        %756 = vmatpush1.msra.mxu0 0.0
        %757 = vmatprep.subr.mxu0 0.0
        %758 = vmatpush1.msra.mxu0 0.0
        %759 = vmatprep.subr.mxu0 0.0
        %760 = vmatpush1.msra.mxu0 0.0
        %761 = vmatprep.subr.mxu0 0.0
        %762 = vmatpush1.msra.mxu0 0.0
        %763 = vmatprep.subr.mxu0 0.0
        %764 = vmatpush1.msra.mxu0 0.0
        %765 = vmatprep.subr.mxu0 0.0
        %766 = vmatpush1.msra.mxu0 0.0
        %767 = vmatprep.subr.mxu0 0.0
        %768 = vmatpush1.msra.mxu0 0.0
        %769 = vmatprep.subr.mxu0 0.0
        %770 = vmatpush1.msra.mxu0 0.0
        %771 = vmatprep.subr.mxu0 0.0
        %772 = vmatpush1.msra.mxu0 0.0
        %773 = vmatprep.subr.mxu0 0.0
        %774 = vmatpush1.msra.mxu0 0.0
        %775 = vmatprep.subr.mxu0 0.0
        %776 = vmatpush1.msra.mxu0 0.0
        %777 = vmatprep.subr.mxu0 0.0
        %778 = vmatpush1.msra.mxu0 0.0
        %779 = vmatprep.mubr.f32.mxu0 0.0
        %780 = vmatmul.mubr.f32.gmra.mrb[0].mxu0 %v713
        %v781 = vpop.f32.mrb[0].mxu0
        %v782 = vadd.f32 0.0, %v781
        %v783 = vpop.f32.mrb[0].mxu0
        %784 = vdwg.mxu0
        %785 = vst.msk [vmem:[%s350] sm:$0x1] %vm699, %v710
        %786 = vst [vmem:[%s344] sm:$0x1] %v782
        %s787 = sand.u32 %s178, 1
        %s788 = scalar_lea.sflag [#allocation6], %s787
        %s789 = sand.u32 %s178, 1
        %s790 = scalar_lea.vmem [#allocation10], %s789
        %s791 = sand.u32 %s204, 1
        %s792 = scalar_lea.sflag [#allocation12], %s791
        %s793 = sand.u32 %s204, 1
        %s794 = scalar_lea.vmem [#allocation11], %s793
        // Predicated region
        $region57: #{tpu_custom_call.1} parent=43 // pred_check
          %p795 = pneg %p188
        $region58: #{tpu_custom_call.1} parent=43 // pred_check_branch
          %797 = sbr.rel (%p795) target = $region60
        $region59: #{tpu_custom_call.1} parent=43 // pred_region
          %s799 = ssub.s32 16, 16
          %800 = vsyncadd %s788, %s799
          %s801 = smul.addr %s34, 16
          %s802 = scalar_lea.hbm %s7, %s801
          %s804 = sshll.u32 %s790, 4
          %s805 = int_to_ptr.vmem [resolvable:$true] %s804
          %807 = dma.vmem_to_hbm [thread:$0]  %s805, 16, %s802, %s788
        $region60: #{tpu_custom_call.1} parent=43 // pred_fallthru
          _
        // Predicated region
        $region61: #{tpu_custom_call.1} parent=43 // pred_check
          %p808 = pneg %p214
        $region62: #{tpu_custom_call.1} parent=43 // pred_check_branch
          %810 = sbr.rel (%p808) target = $region64
        $region63: #{tpu_custom_call.1} parent=43 // pred_region
          %s812 = ssub.s32 16, 16
          %813 = vsyncadd %s792, %s812
          %s814 = smul.addr %s34, 16
          %s815 = scalar_lea.hbm %s8, %s814
          %s817 = sshll.u32 %s794, 4
          %s818 = int_to_ptr.vmem [resolvable:$true] %s817
          %820 = dma.vmem_to_hbm [thread:$0]  %s818, 16, %s815, %s792
        $region64: #{tpu_custom_call.1} parent=43 // pred_fallthru
          _
      $region44: #{tpu_custom_call.1} parent=5 // pred_fallthru
        _
      %p821 = scmp.le.s32.totalorder 2, %s29
      // Predicated region
      $region65: #{tpu_custom_call.1} parent=5 // pred_check
        %p822 = pneg %p821
      $region66: #{tpu_custom_call.1} parent=5 // pred_check_branch
        %824 = sbr.rel (%p822) target = $region68
      $region67: #{tpu_custom_call.1} parent=5 // pred_region
        %s825 = ssub.s32 %s29, 2
        // Predicated region
        $region69: #{tpu_custom_call.1} parent=67 // pred_check
          %p826 = pneg %p194
        $region70: #{tpu_custom_call.1} parent=67 // pred_check_branch
          %828 = sbr.rel (%p826) target = $region72
        $region71: #{tpu_custom_call.1} parent=67 // pred_region
          %s829 = sand.u32 %s179, 1
          %s830 = scalar_lea.sflag [#allocation6], %s829
          %s831 = sand.u32 %s179, 1
          %s832 = scalar_lea.vmem [#allocation10], %s831
          %833 = dma.done %s830, 16
        $region72: #{tpu_custom_call.1} parent=67 // pred_fallthru
          _
        // Predicated region
        $region73: #{tpu_custom_call.1} parent=67 // pred_check
          %p834 = pneg %p220
        $region74: #{tpu_custom_call.1} parent=67 // pred_check_branch
          %836 = sbr.rel (%p834) target = $region76
        $region75: #{tpu_custom_call.1} parent=67 // pred_region
          %s837 = sand.u32 %s205, 1
          %s838 = scalar_lea.sflag [#allocation12], %s837
          %s839 = sand.u32 %s205, 1
          %s840 = scalar_lea.vmem [#allocation11], %s839
          %841 = dma.done %s838, 16
        $region76: #{tpu_custom_call.1} parent=67 // pred_fallthru
          _
      $region68: #{tpu_custom_call.1} parent=5 // pred_fallthru
        _
    $region6: #{tpu_custom_call.1} parent=1 // loop_footer
      %s33 = sadd.s32 1, %s29
    $region7: #{tpu_custom_call.1} parent=1 // loop_footer_branch
      %28 = sbr.rel target = $region3
    $region8: #{tpu_custom_call.1} parent=1 // loop_exit
      _
    %842 = vsyncpa [#allocation5], 1
    %s843 = scalar_lea.sflag [#allocation5], 1
    %844 = vsyncpa %s843, 1
    %845 = vsyncpa [#allocation8], 1
    %846 = vsyncpa [#allocation6], 1
    %s847 = scalar_lea.sflag [#allocation6], 1
    %848 = vsyncpa %s847, 1
    %849 = vsyncpa [#allocation12], 1
    %s850 = scalar_lea.sflag [#allocation12], 1
    %851 = vsyncpa %s850, 1

</llo_original>
